<compile_context>
chip_gen: v7x
topology: tpu7x:2x2x1
jax: 0.10.0
libtpu: 0.0.40
codegen_flags: <defaults>
</compile_context>

<pallas_src>
import jax
import jax.numpy as jnp
from jax.experimental import pallas as pl
from jax.experimental.pallas import tpu as pltpu

EPS = 1e-5


def _make_mlp_kernel(num_hidden, batch):
    """Builds the fused kernel for `num_hidden` (Linear -> BN(train) -> ReLU)
    layers followed by a final Linear.  All operands are VMEM-resident; hidden
    activations are feature-major (features, batch) so batch is on lanes."""
    inv_b = 1.0 / batch

    def kernel(*refs):
        x_ref = refs[0]            # (batch, in_features), natural batch-major
        o_ref = refs[-1]           # (batch, num_classes)
        layer_refs = refs[1:-1]    # [wT, gamma, beta] * H  +  [w_out, b_out]

        h = None
        for li in range(num_hidden):
            wT_ref, g_ref, be_ref = layer_refs[3 * li:3 * li + 3]
            if li == 0:
                # (H0, In) x (B, In) contracted on In -> (H0, B); the MXU
                # consumes x in its natural layout, no explicit transpose.
                h = jax.lax.dot_general(
                    wT_ref[...], x_ref[...],
                    dimension_numbers=(((1,), (1,)), ((), ())),
                    preferred_element_type=jnp.float32)
            else:
                h = jnp.dot(wT_ref[...], h,
                            preferred_element_type=jnp.float32)       # (Hi, B)

            # BatchNorm1d (training): per-feature stats over the batch, which
            # is the lane axis here -> lane-dense reductions.  The preceding
            # Linear's bias is cancelled by the mean subtraction and is never
            # sent to the kernel.  (Optional: both sums could also be done on
            # the MXU via a ones-matvec to free the XLU.)
            mean = jnp.sum(h, axis=1, keepdims=True) * inv_b           # (Hi, 1)
            c = h - mean
            var = jnp.sum(c * c, axis=1, keepdims=True) * inv_b        # (Hi, 1)
            scale = g_ref[...] * jax.lax.rsqrt(var + EPS)              # EUP rsqrt
            h = jnp.maximum(c * scale + be_ref[...], 0.0)              # BN + ReLU

        w_out_ref, b_out_ref = layer_refs[3 * num_hidden:]
        # Final Linear straight back to batch-major:
        # (H_last, B) contracted with (H_last, C) on H_last -> (B, C).
        out = jax.lax.dot_general(
            h, w_out_ref[...],
            dimension_numbers=(((0,), (0,)), ((), ())),
            preferred_element_type=jnp.float32)
        o_ref[...] = (out + b_out_ref[...]).astype(o_ref.dtype)

    return kernel


def prepare_params(params):
    """One-time (hoisted out of the hot path) param preparation.

    `params` is the PyTorch-style flat tuple
        (w1, b1, g1, be1, ..., wH, bH, gH, beH, w_out, b_out)
    with w_i (in, out) and b/g/be (1, out).  Returns the kernel operand tuple
        (w1^T, g1', be1', ..., wH^T, gH', beH', w_out, b_out)
    where hidden-layer biases are dropped (exactly cancelled by the BN batch
    mean), hidden weights are pre-transposed to (out, in) for the
    feature-major matmuls, and gamma/beta become (out, 1) columns.
    """
    num_hidden = (len(params) - 2) // 4
    prepared = []
    idx = 0
    for _ in range(num_hidden):
        w, _b, g, be = params[idx:idx + 4]
        idx += 4
        prepared += [jnp.asarray(w).T,
                     jnp.asarray(g).reshape(-1, 1),
                     jnp.asarray(be).reshape(-1, 1)]
    w_out, b_out = params[idx:idx + 2]
    prepared += [jnp.asarray(w_out), jnp.asarray(b_out).reshape(1, -1)]
    return tuple(prepared)


def mlp_forward(x, kernel_params):
    """Fused MLP forward.  `kernel_params` comes from prepare_params()."""
    batch = x.shape[0]
    num_hidden = (len(kernel_params) - 2) // 3
    num_classes = kernel_params[-1].shape[-1]
    vmem = pl.BlockSpec(memory_space=pltpu.MemorySpace.VMEM)
    # Everything (~200 KiB) is VMEM-resident on every generation, so a single
    # un-gridded invocation is launch-overhead bound; tiling would only add
    # per-step cost.
    # TODO(synk): if this MLP is called repeatedly, add a leading grid axis
    # over *independent* micro-batches (dimension_semantics=("parallel",)) to
    # amortize launch/DMA-setup overhead and use both v7x TensorCores — each
    # micro-batch keeps its own BN statistics so the math is unchanged.  If a
    # single batch ever has to be tiled, the batch axis is a reduction axis
    # for BN stats and must be "arbitrary" (two-pass or resident-activation
    # scheme), not "parallel"; re-derive tile sizes for v7x's 64 MiB VMEM and
    # set pltpu.CompilerParams(vmem_limit_bytes=...) explicitly.
    return pl.pallas_call(
        _make_mlp_kernel(num_hidden, batch),
        out_shape=jax.ShapeDtypeStruct((batch, num_classes), jnp.float32),
        in_specs=[vmem] * (1 + len(kernel_params)),
        out_specs=vmem,
    )(x, *kernel_params)


def init_params(key, input_size, hidden_layers, num_classes):
    """Deterministic init mirroring PyTorch's uniform(-1/sqrt(fan_in), +) Linear init."""
    dims = [input_size] + list(hidden_layers)
    params = []
    for i in range(len(hidden_layers)):
        fan_in, fan_out = dims[i], dims[i + 1]
        key, kw, kb = jax.random.split(key, 3)
        bound = 1.0 / (fan_in ** 0.5)
        w = jax.random.uniform(kw, (fan_in, fan_out), jnp.float32, -bound, bound)
        b = jax.random.uniform(kb, (1, fan_out), jnp.float32, -bound, bound)
        gamma = jnp.ones((1, fan_out), jnp.float32)   # BN weight
        beta = jnp.zeros((1, fan_out), jnp.float32)   # BN bias
        params += [w, b, gamma, beta]
    fan_in = hidden_layers[-1]
    key, kw, kb = jax.random.split(key, 3)
    bound = 1.0 / (fan_in ** 0.5)
    w = jax.random.uniform(kw, (fan_in, num_classes), jnp.float32, -bound, bound)
    b = jax.random.uniform(kb, (1, num_classes), jnp.float32, -bound, bound)
    params += [w, b]
    return tuple(params)


def mlp_reference(x, params):
    """Plain-JAX reference matching the PyTorch forward exactly (incl. b1..bH)."""
    num_hidden = (len(params) - 2) // 4
    h = x
    idx = 0
    for _ in range(num_hidden):
        w, b, g, be = params[idx:idx + 4]
        idx += 4
        h = h @ w + b
        mean = jnp.mean(h, axis=0, keepdims=True)
        var = jnp.mean((h - mean) ** 2, axis=0, keepdims=True)
        h = (h - mean) / jnp.sqrt(var + EPS) * g + be
        h = jnp.maximum(h, 0.0)
    w, b = params[idx:idx + 2]
    return h @ w + b


if __name__ == "__main__":
    input_size = 32
    hidden_layers = [64, 32]
    num_classes = 10
    batch = 256  # batch sits on the lane axis in-kernel; 256 fills the MXU N dim

    key = jax.random.PRNGKey(0)
    key, kx = jax.random.split(key)
    x = jax.random.normal(kx, (batch, input_size), jnp.float32)
    params = init_params(key, input_size, hidden_layers, num_classes)
    kparams = prepare_params(params)   # one-time, outside the per-forward path

    out = mlp_forward(x, kparams)
    out = jax.block_until_ready(out)

    ref = mlp_reference(x, params)
    assert out.shape == (batch, num_classes)
    assert jnp.allclose(out, ref, atol=2e-4, rtol=2e-4), "mismatch vs reference"

    print("KERNEL_OK")
</pallas_src>

<mosaic_0001>
module attributes {stable_mosaic.version = 11 : i64} {
  func.func @kernel(%arg0: memref<256x32xf32, #tpu.memory_space<vmem>>, %arg1: memref<64x32xf32, #tpu.memory_space<vmem>>, %arg2: memref<64x1xf32, #tpu.memory_space<vmem>>, %arg3: memref<64x1xf32, #tpu.memory_space<vmem>>, %arg4: memref<32x64xf32, #tpu.memory_space<vmem>>, %arg5: memref<32x1xf32, #tpu.memory_space<vmem>>, %arg6: memref<32x1xf32, #tpu.memory_space<vmem>>, %arg7: memref<32x10xf32, #tpu.memory_space<vmem>>, %arg8: memref<1x10xf32, #tpu.memory_space<vmem>>, %arg9: memref<256x10xf32, #tpu.memory_space<vmem>>) attributes {dimension_semantics = [], scalar_prefetch = 0 : i64, scratch_operands = 0 : i64, tpu.core_type = #tpu.core_type<tc>} {
    %c0 = arith.constant 0 : index
    %c0_0 = arith.constant 0 : index
    %0 = vector.load %arg1[%c0, %c0_0] : memref<64x32xf32, #tpu.memory_space<vmem>>, vector<64x32xf32>
    %c0_1 = arith.constant 0 : index
    %c0_2 = arith.constant 0 : index
    %1 = vector.load %arg0[%c0_1, %c0_2] : memref<256x32xf32, #tpu.memory_space<vmem>>, vector<256x32xf32>
    %cst = arith.constant dense<0.000000e+00> : vector<64x256xf32>
    %2 = tpu.matmul %0, %1, %cst {dimension_numbers = #tpu.dot_dimension_numbers<[1], [1], [0], [0], [0, 0, 1, 0], [], []>} : vector<64x32xf32>, vector<256x32xf32>, vector<64x256xf32> -> vector<64x256xf32>
    %cst_3 = arith.constant dense<0.000000e+00> : vector<64xf32>
    %3 = vector.multi_reduction <add>, %2, %cst_3 [1] : vector<64x256xf32> to vector<64xf32>
    %4 = vector.shape_cast %3 : vector<64xf32> to vector<64x1xf32>
    %cst_4 = arith.constant 3.906250e-03 : f32
    %5 = vector.broadcast %cst_4 : f32 to vector<64x1xf32>
    %6 = arith.mulf %4, %5 : vector<64x1xf32>
    %7 = vector.broadcast %6 : vector<64x1xf32> to vector<64x256xf32>
    %8 = arith.subf %2, %7 : vector<64x256xf32>
    %9 = arith.mulf %8, %8 : vector<64x256xf32>
    %cst_5 = arith.constant dense<0.000000e+00> : vector<64xf32>
    %10 = vector.multi_reduction <add>, %9, %cst_5 [1] : vector<64x256xf32> to vector<64xf32>
    %11 = vector.shape_cast %10 : vector<64xf32> to vector<64x1xf32>
    %cst_6 = arith.constant 3.906250e-03 : f32
    %12 = vector.broadcast %cst_6 : f32 to vector<64x1xf32>
    %13 = arith.mulf %11, %12 : vector<64x1xf32>
    %c0_7 = arith.constant 0 : index
    %c0_8 = arith.constant 0 : index
    %14 = vector.load %arg2[%c0_7, %c0_8] : memref<64x1xf32, #tpu.memory_space<vmem>>, vector<64x1xf32>
    %cst_9 = arith.constant 9.99999974E-6 : f32
    %15 = vector.broadcast %cst_9 : f32 to vector<64x1xf32>
    %16 = arith.addf %13, %15 : vector<64x1xf32>
    %17 = math.rsqrt %16 : vector<64x1xf32>
    %18 = arith.mulf %14, %17 : vector<64x1xf32>
    %19 = vector.broadcast %18 : vector<64x1xf32> to vector<64x256xf32>
    %20 = arith.mulf %8, %19 : vector<64x256xf32>
    %c0_10 = arith.constant 0 : index
    %c0_11 = arith.constant 0 : index
    %21 = vector.load %arg3[%c0_10, %c0_11] : memref<64x1xf32, #tpu.memory_space<vmem>>, vector<64x1xf32>
    %22 = vector.broadcast %21 : vector<64x1xf32> to vector<64x256xf32>
    %23 = arith.addf %20, %22 : vector<64x256xf32>
    %cst_12 = arith.constant 0.000000e+00 : f32
    %24 = vector.broadcast %cst_12 : f32 to vector<64x256xf32>
    %25 = arith.maximumf %23, %24 : vector<64x256xf32>
    %c0_13 = arith.constant 0 : index
    %c0_14 = arith.constant 0 : index
    %26 = vector.load %arg4[%c0_13, %c0_14] : memref<32x64xf32, #tpu.memory_space<vmem>>, vector<32x64xf32>
    %cst_15 = arith.constant dense<0.000000e+00> : vector<32x256xf32>
    %27 = tpu.matmul %26, %25, %cst_15 {dimension_numbers = #tpu.dot_dimension_numbers<[1], [0], [0], [1], [0, 0, 1, 1], [], []>} : vector<32x64xf32>, vector<64x256xf32>, vector<32x256xf32> -> vector<32x256xf32>
    %cst_16 = arith.constant dense<0.000000e+00> : vector<32xf32>
    %28 = vector.multi_reduction <add>, %27, %cst_16 [1] : vector<32x256xf32> to vector<32xf32>
    %29 = vector.shape_cast %28 : vector<32xf32> to vector<32x1xf32>
    %cst_17 = arith.constant 3.906250e-03 : f32
    %30 = vector.broadcast %cst_17 : f32 to vector<32x1xf32>
    %31 = arith.mulf %29, %30 : vector<32x1xf32>
    %32 = vector.broadcast %31 : vector<32x1xf32> to vector<32x256xf32>
    %33 = arith.subf %27, %32 : vector<32x256xf32>
    %34 = arith.mulf %33, %33 : vector<32x256xf32>
    %cst_18 = arith.constant dense<0.000000e+00> : vector<32xf32>
    %35 = vector.multi_reduction <add>, %34, %cst_18 [1] : vector<32x256xf32> to vector<32xf32>
    %36 = vector.shape_cast %35 : vector<32xf32> to vector<32x1xf32>
    %cst_19 = arith.constant 3.906250e-03 : f32
    %37 = vector.broadcast %cst_19 : f32 to vector<32x1xf32>
    %38 = arith.mulf %36, %37 : vector<32x1xf32>
    %c0_20 = arith.constant 0 : index
    %c0_21 = arith.constant 0 : index
    %39 = vector.load %arg5[%c0_20, %c0_21] : memref<32x1xf32, #tpu.memory_space<vmem>>, vector<32x1xf32>
    %cst_22 = arith.constant 9.99999974E-6 : f32
    %40 = vector.broadcast %cst_22 : f32 to vector<32x1xf32>
    %41 = arith.addf %38, %40 : vector<32x1xf32>
    %42 = math.rsqrt %41 : vector<32x1xf32>
    %43 = arith.mulf %39, %42 : vector<32x1xf32>
    %44 = vector.broadcast %43 : vector<32x1xf32> to vector<32x256xf32>
    %45 = arith.mulf %33, %44 : vector<32x256xf32>
    %c0_23 = arith.constant 0 : index
    %c0_24 = arith.constant 0 : index
    %46 = vector.load %arg6[%c0_23, %c0_24] : memref<32x1xf32, #tpu.memory_space<vmem>>, vector<32x1xf32>
    %47 = vector.broadcast %46 : vector<32x1xf32> to vector<32x256xf32>
    %48 = arith.addf %45, %47 : vector<32x256xf32>
    %cst_25 = arith.constant 0.000000e+00 : f32
    %49 = vector.broadcast %cst_25 : f32 to vector<32x256xf32>
    %50 = arith.maximumf %48, %49 : vector<32x256xf32>
    %c0_26 = arith.constant 0 : index
    %c0_27 = arith.constant 0 : index
    %51 = vector.load %arg7[%c0_26, %c0_27] : memref<32x10xf32, #tpu.memory_space<vmem>>, vector<32x10xf32>
    %cst_28 = arith.constant dense<0.000000e+00> : vector<256x10xf32>
    %52 = tpu.matmul %50, %51, %cst_28 {dimension_numbers = #tpu.dot_dimension_numbers<[0], [0], [1], [1], [0, 1, 1, 1], [], []>} : vector<32x256xf32>, vector<32x10xf32>, vector<256x10xf32> -> vector<256x10xf32>
    %c0_29 = arith.constant 0 : index
    %c0_30 = arith.constant 0 : index
    %53 = vector.load %arg8[%c0_29, %c0_30] : memref<1x10xf32, #tpu.memory_space<vmem>>, vector<1x10xf32>
    %54 = vector.broadcast %53 : vector<1x10xf32> to vector<256x10xf32>
    %55 = arith.addf %52, %54 : vector<256x10xf32>
    %c0_31 = arith.constant 0 : index
    %c0_32 = arith.constant 0 : index
    %56 = vector.load %arg9[%c0_31, %c0_32] : memref<256x10xf32, #tpu.memory_space<vmem>>, vector<256x10xf32>
    tpu.vector_store %arg9[%c0_31, %c0_32], %55 {strides = array<i32>} : memref<256x10xf32, #tpu.memory_space<vmem>>, vector<256x10xf32>,
    return
  }
}

</mosaic_0001>

<llo_original>
// kernel: tpu_custom_call.1
$region0: #{tpu_custom_call.1}
  #allocation0 [shape = 'u32[]', space=smem, size = 0x4, offset = 0x4, fixed_abs, tag = 'smem constant byte address 0x4 - core index']
  #allocation1 [shape = 'u32[144,128]{1,0:T(1,128)}', space=vmem, size = 0x12000, scoped, tag = 'internal scratch']
  %s0 = inlined_call_operand.vmem [shape: f32[256,32], index: 0, kind: input, shape index: {}]
  %s1 = inlined_call_operand.vmem [shape: f32[64,32], index: 1, kind: input, shape index: {}]
  %s2 = inlined_call_operand.vmem [shape: f32[64,1], index: 2, kind: input, shape index: {}]
  %s3 = inlined_call_operand.vmem [shape: f32[64,1], index: 3, kind: input, shape index: {}]
  %s4 = inlined_call_operand.vmem [shape: f32[32,64], index: 4, kind: input, shape index: {}]
  %s5 = inlined_call_operand.vmem [shape: f32[32,1], index: 5, kind: input, shape index: {}]
  %s6 = inlined_call_operand.vmem [shape: f32[32,1], index: 6, kind: input, shape index: {}]
  %s7 = inlined_call_operand.vmem [shape: f32[32,10], index: 7, kind: input, shape index: {}]
  %s8 = inlined_call_operand.vmem [shape: f32[1,10], index: 8, kind: input, shape index: {}]
  %s9 = inlined_call_operand.vmem [shape: f32[256,10], index: 9, kind: output, shape index: {}]
  %s10 = sld [smem:[#allocation0]]
  $region46: #{tpu_custom_call.1} parent=0
    _
  %s12 = ssub.s32 1, %s10
  %s13 = scalar_select 0, %s12, %s10
  // Predicated region
  $region2: #{tpu_custom_call.1} parent=0 // pred_check
    _
  $region3: #{tpu_custom_call.1} parent=0 // pred_check_branch
    %15 = sbr.rel (0) target = $region5
  $region4: #{tpu_custom_call.1} parent=0 // pred_region
    _
  $region5: #{tpu_custom_call.1} parent=0 // pred_fallthru
    _
  // Predicated region
  $region6: #{tpu_custom_call.1} parent=0 // pred_check
    _
  $region7: #{tpu_custom_call.1} parent=0 // pred_check_branch
    %17 = sbr.rel (0) target = $region9
  $region8: #{tpu_custom_call.1} parent=0 // pred_region
    _
  $region9: #{tpu_custom_call.1} parent=0 // pred_fallthru
    _
  // Predicated region
  $region10: #{tpu_custom_call.1} parent=0 // pred_check
    _
  $region11: #{tpu_custom_call.1} parent=0 // pred_check_branch
    %19 = sbr.rel (0) target = $region13
  $region12: #{tpu_custom_call.1} parent=0 // pred_region
    _
  $region13: #{tpu_custom_call.1} parent=0 // pred_fallthru
    _
  // Predicated region
  $region14: #{tpu_custom_call.1} parent=0 // pred_check
    _
  $region15: #{tpu_custom_call.1} parent=0 // pred_check_branch
    %21 = sbr.rel (0) target = $region17
  $region16: #{tpu_custom_call.1} parent=0 // pred_region
    _
  $region17: #{tpu_custom_call.1} parent=0 // pred_fallthru
    _
  // Predicated region
  $region18: #{tpu_custom_call.1} parent=0 // pred_check
    _
  $region19: #{tpu_custom_call.1} parent=0 // pred_check_branch
    %23 = sbr.rel (0) target = $region21
  $region20: #{tpu_custom_call.1} parent=0 // pred_region
    _
  $region21: #{tpu_custom_call.1} parent=0 // pred_fallthru
    _
  // Predicated region
  $region22: #{tpu_custom_call.1} parent=0 // pred_check
    _
  $region23: #{tpu_custom_call.1} parent=0 // pred_check_branch
    %25 = sbr.rel (0) target = $region25
  $region24: #{tpu_custom_call.1} parent=0 // pred_region
    _
  $region25: #{tpu_custom_call.1} parent=0 // pred_fallthru
    _
  // Predicated region
  $region26: #{tpu_custom_call.1} parent=0 // pred_check
    _
  $region27: #{tpu_custom_call.1} parent=0 // pred_check_branch
    %27 = sbr.rel (0) target = $region29
  $region28: #{tpu_custom_call.1} parent=0 // pred_region
    _
  $region29: #{tpu_custom_call.1} parent=0 // pred_fallthru
    _
  // Predicated region
  $region30: #{tpu_custom_call.1} parent=0 // pred_check
    _
  $region31: #{tpu_custom_call.1} parent=0 // pred_check_branch
    %29 = sbr.rel (0) target = $region33
  $region32: #{tpu_custom_call.1} parent=0 // pred_region
    _
  $region33: #{tpu_custom_call.1} parent=0 // pred_fallthru
    _
  // Predicated region
  $region34: #{tpu_custom_call.1} parent=0 // pred_check
    _
  $region35: #{tpu_custom_call.1} parent=0 // pred_check_branch
    %31 = sbr.rel (0) target = $region37
  $region36: #{tpu_custom_call.1} parent=0 // pred_region
    _
  $region37: #{tpu_custom_call.1} parent=0 // pred_fallthru
    _
  %v32 = vld [vmem:[%s1] sm:$0xff]
  %v33 = vld [vmem:[%s1 + $0x8] sm:$0xff]
  %v34 = vld [vmem:[%s1 + $0x10] sm:$0xff]
  %v35 = vld [vmem:[%s1 + $0x18] sm:$0xff]
  %v36 = vld [vmem:[%s1 + $0x20] sm:$0xff]
  %v37 = vld [vmem:[%s1 + $0x28] sm:$0xff]
  %v38 = vld [vmem:[%s1 + $0x30] sm:$0xff]
  %v39 = vld [vmem:[%s1 + $0x38] sm:$0xff]
  %v40 = vld [vmem:[%s0] sm:$0xff]
  %v41 = vld [vmem:[%s0 + $0x8] sm:$0xff]
  %v42 = vld [vmem:[%s0 + $0x10] sm:$0xff]
  %v43 = vld [vmem:[%s0 + $0x18] sm:$0xff]
  %v44 = vld [vmem:[%s0 + $0x20] sm:$0xff]
  %v45 = vld [vmem:[%s0 + $0x28] sm:$0xff]
  %v46 = vld [vmem:[%s0 + $0x30] sm:$0xff]
  %v47 = vld [vmem:[%s0 + $0x38] sm:$0xff]
  %v48 = vld [vmem:[%s0 + $0x40] sm:$0xff]
  %v49 = vld [vmem:[%s0 + $0x48] sm:$0xff]
  %v50 = vld [vmem:[%s0 + $0x50] sm:$0xff]
  %v51 = vld [vmem:[%s0 + $0x58] sm:$0xff]
  %v52 = vld [vmem:[%s0 + $0x60] sm:$0xff]
  %v53 = vld [vmem:[%s0 + $0x68] sm:$0xff]
  %v54 = vld [vmem:[%s0 + $0x70] sm:$0xff]
  %v55 = vld [vmem:[%s0 + $0x78] sm:$0xff]
  %v56 = vld [vmem:[%s0 + $0x80] sm:$0xff]
  %v57 = vld [vmem:[%s0 + $0x88] sm:$0xff]
  %v58 = vld [vmem:[%s0 + $0x90] sm:$0xff]
  %v59 = vld [vmem:[%s0 + $0x98] sm:$0xff]
  %v60 = vld [vmem:[%s0 + $0xa0] sm:$0xff]
  %v61 = vld [vmem:[%s0 + $0xa8] sm:$0xff]
  %v62 = vld [vmem:[%s0 + $0xb0] sm:$0xff]
  %v63 = vld [vmem:[%s0 + $0xb8] sm:$0xff]
  %v64 = vld [vmem:[%s0 + $0xc0] sm:$0xff]
  %v65 = vld [vmem:[%s0 + $0xc8] sm:$0xff]
  %v66 = vld [vmem:[%s0 + $0xd0] sm:$0xff]
  %v67 = vld [vmem:[%s0 + $0xd8] sm:$0xff]
  %v68 = vld [vmem:[%s0 + $0xe0] sm:$0xff]
  %v69 = vld [vmem:[%s0 + $0xe8] sm:$0xff]
  %v70 = vld [vmem:[%s0 + $0xf0] sm:$0xff]
  %v71 = vld [vmem:[%s0 + $0xf8] sm:$0xff]
  %vm72 = vcmask 261120
  %v74 = vsel %vm72, %v32, 0
  %v77 = vsel %vm72, %v33, 0
  %v80 = vsel %vm72, %v34, 0
  %v83 = vsel %vm72, %v35, 0
  %v86 = vsel %vm72, %v36, 0
  %v89 = vsel %vm72, %v37, 0
  %v92 = vsel %vm72, %v38, 0
  %v95 = vsel %vm72, %v39, 0
  %v98 = vsel %vm72, %v40, 0
  %v101 = vsel %vm72, %v41, 0
  %v104 = vsel %vm72, %v42, 0
  %v107 = vsel %vm72, %v43, 0
  %v110 = vsel %vm72, %v44, 0
  %v113 = vsel %vm72, %v45, 0
  %v116 = vsel %vm72, %v46, 0
  %v119 = vsel %vm72, %v47, 0
  %v122 = vsel %vm72, %v48, 0
  %v125 = vsel %vm72, %v49, 0
  %v128 = vsel %vm72, %v50, 0
  %v131 = vsel %vm72, %v51, 0
  %v134 = vsel %vm72, %v52, 0
  %v137 = vsel %vm72, %v53, 0
  %v140 = vsel %vm72, %v54, 0
  %v143 = vsel %vm72, %v55, 0
  %v146 = vsel %vm72, %v56, 0
  %v149 = vsel %vm72, %v57, 0
  %v152 = vsel %vm72, %v58, 0
  %v155 = vsel %vm72, %v59, 0
  %v158 = vsel %vm72, %v60, 0
  %v161 = vsel %vm72, %v61, 0
  %v164 = vsel %vm72, %v62, 0
  %v167 = vsel %vm72, %v63, 0
  %v170 = vsel %vm72, %v64, 0
  %v173 = vsel %vm72, %v65, 0
  %v176 = vsel %vm72, %v66, 0
  %v179 = vsel %vm72, %v67, 0
  %v182 = vsel %vm72, %v68, 0
  %v185 = vsel %vm72, %v69, 0
  %v188 = vsel %vm72, %v70, 0
  %v191 = vsel %vm72, %v71, 0
  %193 = vmatprep.subr.mxu0 0.0
  %194 = vmatpush1.xpose.msra.mxu0 %v98
  %195 = vmatprep.subr.mxu0 0.0
  %196 = vmatpush1.xpose.msra.mxu0 %v101
  %197 = vmatprep.subr.mxu0 0.0
  %198 = vmatpush1.xpose.msra.mxu0 %v104
  %199 = vmatprep.subr.mxu0 0.0
  %200 = vmatpush1.xpose.msra.mxu0 %v107
  %201 = vmatprep.subr.mxu0 0.0
  %202 = vmatpush1.xpose.msra.mxu0 %v110
  %203 = vmatprep.subr.mxu0 0.0
  %204 = vmatpush1.xpose.msra.mxu0 %v113
  %205 = vmatprep.subr.mxu0 0.0
  %206 = vmatpush1.xpose.msra.mxu0 %v116
  %207 = vmatprep.subr.mxu0 0.0
  %208 = vmatpush1.xpose.msra.mxu0 %v119
  %209 = vmatprep.subr.mxu0 0.0
  %210 = vmatpush1.xpose.msra.mxu0 %v122
  %211 = vmatprep.subr.mxu0 0.0
  %212 = vmatpush1.xpose.msra.mxu0 %v125
  %213 = vmatprep.subr.mxu0 0.0
  %214 = vmatpush1.xpose.msra.mxu0 %v128
  %215 = vmatprep.subr.mxu0 0.0
  %216 = vmatpush1.xpose.msra.mxu0 %v131
  %217 = vmatprep.subr.mxu0 0.0
  %218 = vmatpush1.xpose.msra.mxu0 %v134
  %219 = vmatprep.subr.mxu0 0.0
  %220 = vmatpush1.xpose.msra.mxu0 %v137
  %221 = vmatprep.subr.mxu0 0.0
  %222 = vmatpush1.xpose.msra.mxu0 %v140
  %223 = vmatprep.subr.mxu0 0.0
  %224 = vmatpush1.xpose.msra.mxu0 %v143
  %225 = vmatprep.subr.mxu0 0.0
  %226 = vmatpush1.xpose.msra.mxu0 %v146
  %227 = vmatprep.subr.mxu0 0.0
  %228 = vmatpush1.xpose.msra.mxu0 %v149
  %229 = vmatprep.subr.mxu0 0.0
  %230 = vmatpush1.xpose.msra.mxu0 %v152
  %231 = vmatprep.subr.mxu0 0.0
  %232 = vmatpush1.xpose.msra.mxu0 %v155
  %233 = vmatprep.subr.mxu0 0.0
  %234 = vmatpush1.xpose.msra.mxu0 %v158
  %235 = vmatprep.subr.mxu0 0.0
  %236 = vmatpush1.xpose.msra.mxu0 %v161
  %237 = vmatprep.subr.mxu0 0.0
  %238 = vmatpush1.xpose.msra.mxu0 %v164
  %239 = vmatprep.subr.mxu0 0.0
  %240 = vmatpush1.xpose.msra.mxu0 %v167
  %241 = vmatprep.subr.mxu0 0.0
  %242 = vmatpush1.xpose.msra.mxu0 %v170
  %243 = vmatprep.subr.mxu0 0.0
  %244 = vmatpush1.xpose.msra.mxu0 %v173
  %245 = vmatprep.subr.mxu0 0.0
  %246 = vmatpush1.xpose.msra.mxu0 %v176
  %247 = vmatprep.subr.mxu0 0.0
  %248 = vmatpush1.xpose.msra.mxu0 %v179
  %249 = vmatprep.subr.mxu0 0.0
  %250 = vmatpush1.xpose.msra.mxu0 %v182
  %251 = vmatprep.subr.mxu0 0.0
  %252 = vmatpush1.xpose.msra.mxu0 %v185
  %253 = vmatprep.subr.mxu0 0.0
  %254 = vmatpush1.xpose.msra.mxu0 %v188
  %255 = vmatprep.subr.mxu0 0.0
  %256 = vmatpush1.xpose.msra.mxu0 %v191
  %257 = vmatprep.mubr.f32.mxu0 0.0
  %258 = vmatmul.mubr.f32.gmra.mrb[0].mxu0 %v74
  %v259 = vpop.f32.mrb[0].mxu0
  %v260 = vadd.f32 0.0, %v259
  %v261 = vpop.f32.mrb[0].mxu0
  %v262 = vadd.f32 0.0, %v261
  %263 = vmatprep.mubr.f32.mxu0 0.0
  %264 = vmatmul.mubr.f32.gmra.mrb[0].mxu0 %v77
  %v265 = vpop.f32.mrb[0].mxu0
  %v266 = vadd.f32 0.0, %v265
  %v267 = vpop.f32.mrb[0].mxu0
  %v268 = vadd.f32 0.0, %v267
  %269 = vmatprep.mubr.f32.mxu0 0.0
  %270 = vmatmul.mubr.f32.gmra.mrb[0].mxu0 %v80
  %v271 = vpop.f32.mrb[0].mxu0
  %v272 = vadd.f32 0.0, %v271
  %v273 = vpop.f32.mrb[0].mxu0
  %v274 = vadd.f32 0.0, %v273
  %275 = vmatprep.mubr.f32.mxu0 0.0
  %276 = vmatmul.mubr.f32.gmra.mrb[0].mxu0 %v83
  %v277 = vpop.f32.mrb[0].mxu0
  %v278 = vadd.f32 0.0, %v277
  %v279 = vpop.f32.mrb[0].mxu0
  %v280 = vadd.f32 0.0, %v279
  %281 = vmatprep.mubr.f32.mxu0 0.0
  %282 = vmatmul.mubr.f32.gmra.mrb[0].mxu0 %v86
  %v283 = vpop.f32.mrb[0].mxu0
  %v284 = vadd.f32 0.0, %v283
  %v285 = vpop.f32.mrb[0].mxu0
  %v286 = vadd.f32 0.0, %v285
  %287 = vmatprep.mubr.f32.mxu0 0.0
  %288 = vmatmul.mubr.f32.gmra.mrb[0].mxu0 %v89
  %v289 = vpop.f32.mrb[0].mxu0
  %v290 = vadd.f32 0.0, %v289
  %v291 = vpop.f32.mrb[0].mxu0
  %v292 = vadd.f32 0.0, %v291
  %293 = vmatprep.mubr.f32.mxu0 0.0
  %294 = vmatmul.mubr.f32.gmra.mrb[0].mxu0 %v92
  %v295 = vpop.f32.mrb[0].mxu0
  %v296 = vadd.f32 0.0, %v295
  %v297 = vpop.f32.mrb[0].mxu0
  %v298 = vadd.f32 0.0, %v297
  %299 = vmatprep.mubr.f32.mxu0 0.0
  %300 = vmatmul.mubr.f32.gmra.mrb[0].mxu0 %v95
  %v301 = vpop.f32.mrb[0].mxu0
  %v302 = vadd.f32 0.0, %v301
  %v303 = vpop.f32.mrb[0].mxu0
  %v304 = vadd.f32 0.0, %v303
  %305 = vdwg.mxu0
  %v306 = vadd.f32 %v260, %v262
  %307 = vadd.xlane.f32.xlu0 %v306
  %v308 = vpop.xlane.xlu0 %307
  %v309 = vadd.f32 %v266, %v268
  %310 = vadd.xlane.f32.xlu0 %v309
  %v311 = vpop.xlane.xlu0 %310
  %v312 = vadd.f32 %v272, %v274
  %313 = vadd.xlane.f32.xlu0 %v312
  %v314 = vpop.xlane.xlu0 %313
  %v315 = vadd.f32 %v278, %v280
  %316 = vadd.xlane.f32.xlu0 %v315
  %v317 = vpop.xlane.xlu0 %316
  %v318 = vadd.f32 %v284, %v286
  %319 = vadd.xlane.f32.xlu0 %v318
  %v320 = vpop.xlane.xlu0 %319
  %v321 = vadd.f32 %v290, %v292
  %322 = vadd.xlane.f32.xlu0 %v321
  %v323 = vpop.xlane.xlu0 %322
  %v324 = vadd.f32 %v296, %v298
  %325 = vadd.xlane.f32.xlu0 %v324
  %v326 = vpop.xlane.xlu0 %325
  %v327 = vadd.f32 %v302, %v304
  %328 = vadd.xlane.f32.xlu0 %v327
  %v329 = vpop.xlane.xlu0 %328
  %v330 = vmul.f32 %v308, 0.00390625
  %v331 = vmul.f32 %v311, 0.00390625
  %v332 = vmul.f32 %v314, 0.00390625
  %v333 = vmul.f32 %v317, 0.00390625
  %v334 = vmul.f32 %v320, 0.00390625
  %v335 = vmul.f32 %v323, 0.00390625
  %v336 = vmul.f32 %v326, 0.00390625
  %v337 = vmul.f32 %v329, 0.00390625
  %v338 = vsub.f32 %v260, %v330
  %v339 = vsub.f32 %v262, %v330
  %v340 = vsub.f32 %v266, %v331
  %v341 = vsub.f32 %v268, %v331
  %v342 = vsub.f32 %v272, %v332
  %v343 = vsub.f32 %v274, %v332
  %v344 = vsub.f32 %v278, %v333
  %v345 = vsub.f32 %v280, %v333
  %v346 = vsub.f32 %v284, %v334
  %v347 = vsub.f32 %v286, %v334
  %v348 = vsub.f32 %v290, %v335
  %v349 = vsub.f32 %v292, %v335
  %v350 = vsub.f32 %v296, %v336
  %v351 = vsub.f32 %v298, %v336
  %v352 = vsub.f32 %v302, %v337
  %v353 = vsub.f32 %v304, %v337
  %v354 = vmul.f32 %v338, %v338
  %v355 = vmul.f32 %v339, %v339
  %v356 = vmul.f32 %v340, %v340
  %v357 = vmul.f32 %v341, %v341
  %v358 = vmul.f32 %v342, %v342
  %v359 = vmul.f32 %v343, %v343
  %v360 = vmul.f32 %v344, %v344
  %v361 = vmul.f32 %v345, %v345
  %v362 = vmul.f32 %v346, %v346
  %v363 = vmul.f32 %v347, %v347
  %v364 = vmul.f32 %v348, %v348
  %v365 = vmul.f32 %v349, %v349
  %v366 = vmul.f32 %v350, %v350
  %v367 = vmul.f32 %v351, %v351
  %v368 = vmul.f32 %v352, %v352
  %v369 = vmul.f32 %v353, %v353
  %v370 = vadd.f32 %v354, %v355
  %371 = vadd.xlane.f32.xlu0 %v370
  %v372 = vpop.xlane.xlu0 %371
  %v373 = vadd.f32 %v356, %v357
  %374 = vadd.xlane.f32.xlu0 %v373
  %v375 = vpop.xlane.xlu0 %374
  %v376 = vadd.f32 %v358, %v359
  %377 = vadd.xlane.f32.xlu0 %v376
  %v378 = vpop.xlane.xlu0 %377
  %v379 = vadd.f32 %v360, %v361
  %380 = vadd.xlane.f32.xlu0 %v379
  %v381 = vpop.xlane.xlu0 %380
  %v382 = vadd.f32 %v362, %v363
  %383 = vadd.xlane.f32.xlu0 %v382
  %v384 = vpop.xlane.xlu0 %383
  %v385 = vadd.f32 %v364, %v365
  %386 = vadd.xlane.f32.xlu0 %v385
  %v387 = vpop.xlane.xlu0 %386
  %v388 = vadd.f32 %v366, %v367
  %389 = vadd.xlane.f32.xlu0 %v388
  %v390 = vpop.xlane.xlu0 %389
  %v391 = vadd.f32 %v368, %v369
  %392 = vadd.xlane.f32.xlu0 %v391
  %v393 = vpop.xlane.xlu0 %392
  %v394 = vmul.f32 %v372, 0.00390625
  %v395 = vmul.f32 %v375, 0.00390625
  %v396 = vmul.f32 %v378, 0.00390625
  %v397 = vmul.f32 %v381, 0.00390625
  %v398 = vmul.f32 %v384, 0.00390625
  %v399 = vmul.f32 %v387, 0.00390625
  %v400 = vmul.f32 %v390, 0.00390625
  %v401 = vmul.f32 %v393, 0.00390625
  %v402 = vld [vmem:[%s2] sm:$0xff]
  %v403 = vld [vmem:[%s2 + $0x8] sm:$0xff]
  %v404 = vld [vmem:[%s2 + $0x10] sm:$0xff]
  %v405 = vld [vmem:[%s2 + $0x18] sm:$0xff]
  %v406 = vld [vmem:[%s2 + $0x20] sm:$0xff]
  %v407 = vld [vmem:[%s2 + $0x28] sm:$0xff]
  %v408 = vld [vmem:[%s2 + $0x30] sm:$0xff]
  %v409 = vld [vmem:[%s2 + $0x38] sm:$0xff]
  %v410 = vadd.f32 %v394, 1e-05
  %v411 = vadd.f32 %v395, 1e-05
  %v412 = vadd.f32 %v396, 1e-05
  %v413 = vadd.f32 %v397, 1e-05
  %v414 = vadd.f32 %v398, 1e-05
  %v415 = vadd.f32 %v399, 1e-05
  %v416 = vadd.f32 %v400, 1e-05
  %v417 = vadd.f32 %v401, 1e-05
  %v418 = vrsqrt.pop %v410
  %v419 = vrsqrt.pop %v411
  %v420 = vrsqrt.pop %v412
  %v421 = vrsqrt.pop %v413
  %v422 = vrsqrt.pop %v414
  %v423 = vrsqrt.pop %v415
  %v424 = vrsqrt.pop %v416
  %v425 = vrsqrt.pop %v417
  %v426 = vmul.f32 %v402, %v418
  %v427 = vmul.f32 %v403, %v419
  %v428 = vmul.f32 %v404, %v420
  %v429 = vmul.f32 %v405, %v421
  %v430 = vmul.f32 %v406, %v422
  %v431 = vmul.f32 %v407, %v423
  %v432 = vmul.f32 %v408, %v424
  %v433 = vmul.f32 %v409, %v425
  %435 = vset.pattern.permute.xlu0 0
  %436 = vperm.xlu0 %435, %v426
  %v437 = vpop.permute.xlu0 %436
  %440 = vset.pattern.permute.xlu0 0
  %441 = vperm.xlu0 %440, %v427
  %v442 = vpop.permute.xlu0 %441
  %445 = vset.pattern.permute.xlu0 0
  %446 = vperm.xlu0 %445, %v428
  %v447 = vpop.permute.xlu0 %446
  %450 = vset.pattern.permute.xlu0 0
  %451 = vperm.xlu0 %450, %v429
  %v452 = vpop.permute.xlu0 %451
  %455 = vset.pattern.permute.xlu0 0
  %456 = vperm.xlu0 %455, %v430
  %v457 = vpop.permute.xlu0 %456
  %460 = vset.pattern.permute.xlu0 0
  %461 = vperm.xlu0 %460, %v431
  %v462 = vpop.permute.xlu0 %461
  %465 = vset.pattern.permute.xlu0 0
  %466 = vperm.xlu0 %465, %v432
  %v467 = vpop.permute.xlu0 %466
  %470 = vset.pattern.permute.xlu0 0
  %471 = vperm.xlu0 %470, %v433
  %v472 = vpop.permute.xlu0 %471
  %v474 = vmul.f32 %v338, %v437
  %v475 = vmul.f32 %v339, %v437
  %v476 = vmul.f32 %v340, %v442
  %v477 = vmul.f32 %v341, %v442
  %v478 = vmul.f32 %v342, %v447
  %v479 = vmul.f32 %v343, %v447
  %v480 = vmul.f32 %v344, %v452
  %v481 = vmul.f32 %v345, %v452
  %v482 = vmul.f32 %v346, %v457
  %v483 = vmul.f32 %v347, %v457
  %v484 = vmul.f32 %v348, %v462
  %v485 = vmul.f32 %v349, %v462
  %v486 = vmul.f32 %v350, %v467
  %v487 = vmul.f32 %v351, %v467
  %v488 = vmul.f32 %v352, %v472
  %v489 = vmul.f32 %v353, %v472
  %v490 = vld [vmem:[%s3] sm:$0xff]
  %v491 = vld [vmem:[%s3 + $0x8] sm:$0xff]
  %v492 = vld [vmem:[%s3 + $0x10] sm:$0xff]
  %v493 = vld [vmem:[%s3 + $0x18] sm:$0xff]
  %v494 = vld [vmem:[%s3 + $0x20] sm:$0xff]
  %v495 = vld [vmem:[%s3 + $0x28] sm:$0xff]
  %v496 = vld [vmem:[%s3 + $0x30] sm:$0xff]
  %v497 = vld [vmem:[%s3 + $0x38] sm:$0xff]
  %499 = vset.pattern.permute.xlu0 0
  %500 = vperm.xlu0 %499, %v490
  %v501 = vpop.permute.xlu0 %500
  %504 = vset.pattern.permute.xlu0 0
  %505 = vperm.xlu0 %504, %v491
  %v506 = vpop.permute.xlu0 %505
  %509 = vset.pattern.permute.xlu0 0
  %510 = vperm.xlu0 %509, %v492
  %v511 = vpop.permute.xlu0 %510
  %514 = vset.pattern.permute.xlu0 0
  %515 = vperm.xlu0 %514, %v493
  %v516 = vpop.permute.xlu0 %515
  %519 = vset.pattern.permute.xlu0 0
  %520 = vperm.xlu0 %519, %v494
  %v521 = vpop.permute.xlu0 %520
  %524 = vset.pattern.permute.xlu0 0
  %525 = vperm.xlu0 %524, %v495
  %v526 = vpop.permute.xlu0 %525
  %529 = vset.pattern.permute.xlu0 0
  %530 = vperm.xlu0 %529, %v496
  %v531 = vpop.permute.xlu0 %530
  %534 = vset.pattern.permute.xlu0 0
  %535 = vperm.xlu0 %534, %v497
  %v536 = vpop.permute.xlu0 %535
  %v538 = vadd.f32 %v474, %v501
  %v539 = vadd.f32 %v475, %v501
  %v540 = vadd.f32 %v476, %v506
  %v541 = vadd.f32 %v477, %v506
  %v542 = vadd.f32 %v478, %v511
  %v543 = vadd.f32 %v479, %v511
  %v544 = vadd.f32 %v480, %v516
  %v545 = vadd.f32 %v481, %v516
  %v546 = vadd.f32 %v482, %v521
  %v547 = vadd.f32 %v483, %v521
  %v548 = vadd.f32 %v484, %v526
  %v549 = vadd.f32 %v485, %v526
  %v550 = vadd.f32 %v486, %v531
  %v551 = vadd.f32 %v487, %v531
  %v552 = vadd.f32 %v488, %v536
  %v553 = vadd.f32 %v489, %v536
  %v554 = vmax.f32 %v538, 0.0
  %v555 = vmax.f32 %v539, 0.0
  %v556 = vmax.f32 %v540, 0.0
  %v557 = vmax.f32 %v541, 0.0
  %v558 = vmax.f32 %v542, 0.0
  %v559 = vmax.f32 %v543, 0.0
  %v560 = vmax.f32 %v544, 0.0
  %v561 = vmax.f32 %v545, 0.0
  %v562 = vmax.f32 %v546, 0.0
  %v563 = vmax.f32 %v547, 0.0
  %v564 = vmax.f32 %v548, 0.0
  %v565 = vmax.f32 %v549, 0.0
  %v566 = vmax.f32 %v550, 0.0
  %v567 = vmax.f32 %v551, 0.0
  %v568 = vmax.f32 %v552, 0.0
  %v569 = vmax.f32 %v553, 0.0
  %v570 = vld [vmem:[%s4] sm:$0xff]
  %v571 = vld [vmem:[%s4 + $0x8] sm:$0xff]
  %v572 = vld [vmem:[%s4 + $0x10] sm:$0xff]
  %v573 = vld [vmem:[%s4 + $0x18] sm:$0xff]
  %vm574 = vcmask 523264
  %v576 = vsel %vm574, %v570, 0
  %v579 = vsel %vm574, %v571, 0
  %v582 = vsel %vm574, %v572, 0
  %v585 = vsel %vm574, %v573, 0
  %587 = vmatprep.subr.mxu0 %v555
  %588 = vmatpush1.msra.mxu0 %v554
  %589 = vmatprep.subr.mxu0 %v557
  %590 = vmatpush1.msra.mxu0 %v556
  %591 = vmatprep.subr.mxu0 %v559
  %592 = vmatpush1.msra.mxu0 %v558
  %593 = vmatprep.subr.mxu0 %v561
  %594 = vmatpush1.msra.mxu0 %v560
  %595 = vmatprep.subr.mxu0 %v563
  %596 = vmatpush1.msra.mxu0 %v562
  %597 = vmatprep.subr.mxu0 %v565
  %598 = vmatpush1.msra.mxu0 %v564
  %599 = vmatprep.subr.mxu0 %v567
  %600 = vmatpush1.msra.mxu0 %v566
  %601 = vmatprep.subr.mxu0 %v569
  %602 = vmatpush1.msra.mxu0 %v568
  %603 = vmatprep.subr.mxu0 0.0
  %604 = vmatpush1.msra.mxu0 0.0
  %605 = vmatprep.subr.mxu0 0.0
  %606 = vmatpush1.msra.mxu0 0.0
  %607 = vmatprep.subr.mxu0 0.0
  %608 = vmatpush1.msra.mxu0 0.0
  %609 = vmatprep.subr.mxu0 0.0
  %610 = vmatpush1.msra.mxu0 0.0
  %611 = vmatprep.subr.mxu0 0.0
  %612 = vmatpush1.msra.mxu0 0.0
  %613 = vmatprep.subr.mxu0 0.0
  %614 = vmatpush1.msra.mxu0 0.0
  %615 = vmatprep.subr.mxu0 0.0
  %616 = vmatpush1.msra.mxu0 0.0
  %617 = vmatprep.subr.mxu0 0.0
  %618 = vmatpush1.msra.mxu0 0.0
  %619 = vmatprep.subr.mxu0 0.0
  %620 = vmatpush1.msra.mxu0 0.0
  %621 = vmatprep.subr.mxu0 0.0
  %622 = vmatpush1.msra.mxu0 0.0
  %623 = vmatprep.subr.mxu0 0.0
  %624 = vmatpush1.msra.mxu0 0.0
  %625 = vmatprep.subr.mxu0 0.0
  %626 = vmatpush1.msra.mxu0 0.0
  %627 = vmatprep.subr.mxu0 0.0
  %628 = vmatpush1.msra.mxu0 0.0
  %629 = vmatprep.subr.mxu0 0.0
  %630 = vmatpush1.msra.mxu0 0.0
  %631 = vmatprep.subr.mxu0 0.0
  %632 = vmatpush1.msra.mxu0 0.0
  %633 = vmatprep.subr.mxu0 0.0
  %634 = vmatpush1.msra.mxu0 0.0
  %635 = vmatprep.subr.mxu0 0.0
  %636 = vmatpush1.msra.mxu0 0.0
  %637 = vmatprep.subr.mxu0 0.0
  %638 = vmatpush1.msra.mxu0 0.0
  %639 = vmatprep.subr.mxu0 0.0
  %640 = vmatpush1.msra.mxu0 0.0
  %641 = vmatprep.subr.mxu0 0.0
  %642 = vmatpush1.msra.mxu0 0.0
  %643 = vmatprep.subr.mxu0 0.0
  %644 = vmatpush1.msra.mxu0 0.0
  %645 = vmatprep.subr.mxu0 0.0
  %646 = vmatpush1.msra.mxu0 0.0
  %647 = vmatprep.subr.mxu0 0.0
  %648 = vmatpush1.msra.mxu0 0.0
  %649 = vmatprep.subr.mxu0 0.0
  %650 = vmatpush1.msra.mxu0 0.0
  %651 = vmatprep.mubr.f32.mxu0 0.0
  %652 = vmatmul.mubr.f32.gmra.mrb[0].mxu0 %v576
  %v653 = vpop.f32.mrb[0].mxu0
  %v654 = vadd.f32 0.0, %v653
  %v655 = vpop.f32.mrb[0].mxu0
  %v656 = vadd.f32 0.0, %v655
  %657 = vmatprep.mubr.f32.mxu0 0.0
  %658 = vmatmul.mubr.f32.gmra.mrb[0].mxu0 %v579
  %v659 = vpop.f32.mrb[0].mxu0
  %v660 = vadd.f32 0.0, %v659
  %v661 = vpop.f32.mrb[0].mxu0
  %v662 = vadd.f32 0.0, %v661
  %663 = vmatprep.mubr.f32.mxu0 0.0
  %664 = vmatmul.mubr.f32.gmra.mrb[0].mxu0 %v582
  %v665 = vpop.f32.mrb[0].mxu0
  %v666 = vadd.f32 0.0, %v665
  %v667 = vpop.f32.mrb[0].mxu0
  %v668 = vadd.f32 0.0, %v667
  %669 = vmatprep.mubr.f32.mxu0 0.0
  %670 = vmatmul.mubr.f32.gmra.mrb[0].mxu0 %v585
  %v671 = vpop.f32.mrb[0].mxu0
  %v672 = vadd.f32 0.0, %v671
  %v673 = vpop.f32.mrb[0].mxu0
  %v674 = vadd.f32 0.0, %v673
  %675 = vdwg.mxu0
  %v676 = vadd.f32 %v654, %v656
  %677 = vadd.xlane.f32.xlu0 %v676
  %v678 = vpop.xlane.xlu0 %677
  %v679 = vadd.f32 %v660, %v662
  %680 = vadd.xlane.f32.xlu0 %v679
  %v681 = vpop.xlane.xlu0 %680
  %v682 = vadd.f32 %v666, %v668
  %683 = vadd.xlane.f32.xlu0 %v682
  %v684 = vpop.xlane.xlu0 %683
  %v685 = vadd.f32 %v672, %v674
  %686 = vadd.xlane.f32.xlu0 %v685
  %v687 = vpop.xlane.xlu0 %686
  %v688 = vmul.f32 %v678, 0.00390625
  %v689 = vmul.f32 %v681, 0.00390625
  %v690 = vmul.f32 %v684, 0.00390625
  %v691 = vmul.f32 %v687, 0.00390625
  %v692 = vsub.f32 %v654, %v688
  %v693 = vsub.f32 %v656, %v688
  %v694 = vsub.f32 %v660, %v689
  %v695 = vsub.f32 %v662, %v689
  %v696 = vsub.f32 %v666, %v690
  %v697 = vsub.f32 %v668, %v690
  %v698 = vsub.f32 %v672, %v691
  %v699 = vsub.f32 %v674, %v691
  %v700 = vmul.f32 %v692, %v692
  %v701 = vmul.f32 %v693, %v693
  %v702 = vmul.f32 %v694, %v694
  %v703 = vmul.f32 %v695, %v695
  %v704 = vmul.f32 %v696, %v696
  %v705 = vmul.f32 %v697, %v697
  %v706 = vmul.f32 %v698, %v698
  %v707 = vmul.f32 %v699, %v699
  %v708 = vadd.f32 %v700, %v701
  %709 = vadd.xlane.f32.xlu0 %v708
  %v710 = vpop.xlane.xlu0 %709
  %v711 = vadd.f32 %v702, %v703
  %712 = vadd.xlane.f32.xlu0 %v711
  %v713 = vpop.xlane.xlu0 %712
  %v714 = vadd.f32 %v704, %v705
  %715 = vadd.xlane.f32.xlu0 %v714
  %v716 = vpop.xlane.xlu0 %715
  %v717 = vadd.f32 %v706, %v707
  %718 = vadd.xlane.f32.xlu0 %v717
  %v719 = vpop.xlane.xlu0 %718
  %v720 = vmul.f32 %v710, 0.00390625
  %v721 = vmul.f32 %v713, 0.00390625
  %v722 = vmul.f32 %v716, 0.00390625
  %v723 = vmul.f32 %v719, 0.00390625
  %v724 = vld [vmem:[%s5] sm:$0xff]
  %v725 = vld [vmem:[%s5 + $0x8] sm:$0xff]
  %v726 = vld [vmem:[%s5 + $0x10] sm:$0xff]
  %v727 = vld [vmem:[%s5 + $0x18] sm:$0xff]
  %v728 = vadd.f32 %v720, 1e-05
  %v729 = vadd.f32 %v721, 1e-05
  %v730 = vadd.f32 %v722, 1e-05
  %v731 = vadd.f32 %v723, 1e-05
  %v732 = vrsqrt.pop %v728
  %v733 = vrsqrt.pop %v729
  %v734 = vrsqrt.pop %v730
  %v735 = vrsqrt.pop %v731
  %v736 = vmul.f32 %v724, %v732
  %v737 = vmul.f32 %v725, %v733
  %v738 = vmul.f32 %v726, %v734
  %v739 = vmul.f32 %v727, %v735
  %741 = vset.pattern.permute.xlu0 0
  %742 = vperm.xlu0 %741, %v736
  %v743 = vpop.permute.xlu0 %742
  %746 = vset.pattern.permute.xlu0 0
  %747 = vperm.xlu0 %746, %v737
  %v748 = vpop.permute.xlu0 %747
  %751 = vset.pattern.permute.xlu0 0
  %752 = vperm.xlu0 %751, %v738
  %v753 = vpop.permute.xlu0 %752
  %756 = vset.pattern.permute.xlu0 0
  %757 = vperm.xlu0 %756, %v739
  %v758 = vpop.permute.xlu0 %757
  %v760 = vmul.f32 %v692, %v743
  %v761 = vmul.f32 %v693, %v743
  %v762 = vmul.f32 %v694, %v748
  %v763 = vmul.f32 %v695, %v748
  %v764 = vmul.f32 %v696, %v753
  %v765 = vmul.f32 %v697, %v753
  %v766 = vmul.f32 %v698, %v758
  %v767 = vmul.f32 %v699, %v758
  %v768 = vld [vmem:[%s6] sm:$0xff]
  %v769 = vld [vmem:[%s6 + $0x8] sm:$0xff]
  %v770 = vld [vmem:[%s6 + $0x10] sm:$0xff]
  %v771 = vld [vmem:[%s6 + $0x18] sm:$0xff]
  %773 = vset.pattern.permute.xlu0 0
  %774 = vperm.xlu0 %773, %v768
  %v775 = vpop.permute.xlu0 %774
  %778 = vset.pattern.permute.xlu0 0
  %779 = vperm.xlu0 %778, %v769
  %v780 = vpop.permute.xlu0 %779
  %783 = vset.pattern.permute.xlu0 0
  %784 = vperm.xlu0 %783, %v770
  %v785 = vpop.permute.xlu0 %784
  %788 = vset.pattern.permute.xlu0 0
  %789 = vperm.xlu0 %788, %v771
  %v790 = vpop.permute.xlu0 %789
  %v792 = vadd.f32 %v760, %v775
  %v793 = vadd.f32 %v761, %v775
  %v794 = vadd.f32 %v762, %v780
  %v795 = vadd.f32 %v763, %v780
  %v796 = vadd.f32 %v764, %v785
  %v797 = vadd.f32 %v765, %v785
  %v798 = vadd.f32 %v766, %v790
  %v799 = vadd.f32 %v767, %v790
  %v800 = vmax.f32 %v792, 0.0
  %v801 = vmax.f32 %v793, 0.0
  %v802 = vmax.f32 %v794, 0.0
  %v803 = vmax.f32 %v795, 0.0
  %v804 = vmax.f32 %v796, 0.0
  %v805 = vmax.f32 %v797, 0.0
  %v806 = vmax.f32 %v798, 0.0
  %v807 = vmax.f32 %v799, 0.0
  %v808 = vld [vmem:[%s7] sm:$0xff]
  %v809 = vld [vmem:[%s7 + $0x8] sm:$0xff]
  %v810 = vld [vmem:[%s7 + $0x10] sm:$0xff]
  %v811 = vld [vmem:[%s7 + $0x18] sm:$0xff]
  %v812 = vld [vmem:[%s8] sm:$0x1]
  %v814 = vlaneseq
  %v815 = vshrl.u32 %v814, 7
  %v816 = vsub.s32 0, %v815
  %v817 = vrot.slane %v812, %v816
  %819 = vxpose.xlu0.b32.start [1/16] %v800, 128
  %820 = vxpose.xlu0.b32.cont [2/16] %v802, 128
  %821 = vxpose.xlu0.b32.cont [3/16] %v804, 128
  %822 = vxpose.xlu0.b32.cont [4/16] %v806, 128
  %823 = vxpose.xlu0.b32.cont [5/16] 0.0, 128
  %824 = vxpose.xlu0.b32.cont [6/16] 0.0, 128
  %825 = vxpose.xlu0.b32.cont [7/16] 0.0, 128
  %826 = vxpose.xlu0.b32.cont [8/16] 0.0, 128
  %827 = vxpose.xlu0.b32.cont [9/16] 0.0, 128
  %828 = vxpose.xlu0.b32.cont [10/16] 0.0, 128
  %829 = vxpose.xlu0.b32.cont [11/16] 0.0, 128
  %830 = vxpose.xlu0.b32.cont [12/16] 0.0, 128
  %831 = vxpose.xlu0.b32.cont [13/16] 0.0, 128
  %832 = vxpose.xlu0.b32.cont [14/16] 0.0, 128
  %833 = vxpose.xlu0.b32.cont [15/16] 0.0, 128
  %834 = vxpose.xlu0.b32.end [16/16] 0.0, 128
  %v835 = vpop.trf.xlu0
  %v836 = vpop.trf.xlu0
  %v837 = vpop.trf.xlu0
  %v838 = vpop.trf.xlu0
  %v839 = vpop.trf.xlu0
  %v840 = vpop.trf.xlu0
  %v841 = vpop.trf.xlu0
  %v842 = vpop.trf.xlu0
  %v843 = vpop.trf.xlu0
  %v844 = vpop.trf.xlu0
  %v845 = vpop.trf.xlu0
  %v846 = vpop.trf.xlu0
  %v847 = vpop.trf.xlu0
  %v848 = vpop.trf.xlu0
  %v849 = vpop.trf.xlu0
  %v850 = vpop.trf.xlu0
  %851 = vxpose.xlu0.b32.start [1/16] %v801, 128
  %852 = vxpose.xlu0.b32.cont [2/16] %v803, 128
  %853 = vxpose.xlu0.b32.cont [3/16] %v805, 128
  %854 = vxpose.xlu0.b32.cont [4/16] %v807, 128
  %855 = vxpose.xlu0.b32.cont [5/16] 0.0, 128
  %856 = vxpose.xlu0.b32.cont [6/16] 0.0, 128
  %857 = vxpose.xlu0.b32.cont [7/16] 0.0, 128
  %858 = vxpose.xlu0.b32.cont [8/16] 0.0, 128
  %859 = vxpose.xlu0.b32.cont [9/16] 0.0, 128
  %860 = vxpose.xlu0.b32.cont [10/16] 0.0, 128
  %861 = vxpose.xlu0.b32.cont [11/16] 0.0, 128
  %862 = vxpose.xlu0.b32.cont [12/16] 0.0, 128
  %863 = vxpose.xlu0.b32.cont [13/16] 0.0, 128
  %864 = vxpose.xlu0.b32.cont [14/16] 0.0, 128
  %865 = vxpose.xlu0.b32.cont [15/16] 0.0, 128
  %866 = vxpose.xlu0.b32.end [16/16] 0.0, 128
  %v867 = vpop.trf.xlu0
  %v868 = vpop.trf.xlu0
  %v869 = vpop.trf.xlu0
  %v870 = vpop.trf.xlu0
  %v871 = vpop.trf.xlu0
  %v872 = vpop.trf.xlu0
  %v873 = vpop.trf.xlu0
  %v874 = vpop.trf.xlu0
  %v875 = vpop.trf.xlu0
  %v876 = vpop.trf.xlu0
  %v877 = vpop.trf.xlu0
  %v878 = vpop.trf.xlu0
  %v879 = vpop.trf.xlu0
  %v880 = vpop.trf.xlu0
  %v881 = vpop.trf.xlu0
  %v882 = vpop.trf.xlu0
  %v884 = vsel %vm72, %v835, 0
  %v887 = vsel %vm72, %v836, 0
  %v890 = vsel %vm72, %v837, 0
  %v893 = vsel %vm72, %v838, 0
  %v896 = vsel %vm72, %v839, 0
  %v899 = vsel %vm72, %v840, 0
  %v902 = vsel %vm72, %v841, 0
  %v905 = vsel %vm72, %v842, 0
  %v908 = vsel %vm72, %v843, 0
  %v911 = vsel %vm72, %v844, 0
  %v914 = vsel %vm72, %v845, 0
  %v917 = vsel %vm72, %v846, 0
  %v920 = vsel %vm72, %v847, 0
  %v923 = vsel %vm72, %v848, 0
  %v926 = vsel %vm72, %v849, 0
  %v929 = vsel %vm72, %v850, 0
  %v932 = vsel %vm72, %v867, 0
  %v935 = vsel %vm72, %v868, 0
  %v938 = vsel %vm72, %v869, 0
  %v941 = vsel %vm72, %v870, 0
  %v944 = vsel %vm72, %v871, 0
  %v947 = vsel %vm72, %v872, 0
  %v950 = vsel %vm72, %v873, 0
  %v953 = vsel %vm72, %v874, 0
  %v956 = vsel %vm72, %v875, 0
  %v959 = vsel %vm72, %v876, 0
  %v962 = vsel %vm72, %v877, 0
  %v965 = vsel %vm72, %v878, 0
  %v968 = vsel %vm72, %v879, 0
  %v971 = vsel %vm72, %v880, 0
  %v974 = vsel %vm72, %v881, 0
  %v977 = vsel %vm72, %v882, 0
  %979 = vmatprep.subr.mxu0 0.0
  %980 = vmatpush1.msra.mxu0 %v808
  %981 = vmatprep.subr.mxu0 0.0
  %982 = vmatpush1.msra.mxu0 %v809
  %983 = vmatprep.subr.mxu0 0.0
  %984 = vmatpush1.msra.mxu0 %v810
  %985 = vmatprep.subr.mxu0 0.0
  %986 = vmatpush1.msra.mxu0 %v811
  %987 = vmatprep.subr.mxu0 0.0
  %988 = vmatpush1.msra.mxu0 0.0
  %989 = vmatprep.subr.mxu0 0.0
  %990 = vmatpush1.msra.mxu0 0.0
  %991 = vmatprep.subr.mxu0 0.0
  %992 = vmatpush1.msra.mxu0 0.0
  %993 = vmatprep.subr.mxu0 0.0
  %994 = vmatpush1.msra.mxu0 0.0
  %995 = vmatprep.subr.mxu0 0.0
  %996 = vmatpush1.msra.mxu0 0.0
  %997 = vmatprep.subr.mxu0 0.0
  %998 = vmatpush1.msra.mxu0 0.0
  %999 = vmatprep.subr.mxu0 0.0
  %1000 = vmatpush1.msra.mxu0 0.0
  %1001 = vmatprep.subr.mxu0 0.0
  %1002 = vmatpush1.msra.mxu0 0.0
  %1003 = vmatprep.subr.mxu0 0.0
  %1004 = vmatpush1.msra.mxu0 0.0
  %1005 = vmatprep.subr.mxu0 0.0
  %1006 = vmatpush1.msra.mxu0 0.0
  %1007 = vmatprep.subr.mxu0 0.0
  %1008 = vmatpush1.msra.mxu0 0.0
  %1009 = vmatprep.subr.mxu0 0.0
  %1010 = vmatpush1.msra.mxu0 0.0
  %1011 = vmatprep.subr.mxu0 0.0
  %1012 = vmatpush1.msra.mxu0 0.0
  %1013 = vmatprep.subr.mxu0 0.0
  %1014 = vmatpush1.msra.mxu0 0.0
  %1015 = vmatprep.subr.mxu0 0.0
  %1016 = vmatpush1.msra.mxu0 0.0
  %1017 = vmatprep.subr.mxu0 0.0
  %1018 = vmatpush1.msra.mxu0 0.0
  %1019 = vmatprep.subr.mxu0 0.0
  %1020 = vmatpush1.msra.mxu0 0.0
  %1021 = vmatprep.subr.mxu0 0.0
  %1022 = vmatpush1.msra.mxu0 0.0
  %1023 = vmatprep.subr.mxu0 0.0
  %1024 = vmatpush1.msra.mxu0 0.0
  %1025 = vmatprep.subr.mxu0 0.0
  %1026 = vmatpush1.msra.mxu0 0.0
  %1027 = vmatprep.subr.mxu0 0.0
  %1028 = vmatpush1.msra.mxu0 0.0
  %1029 = vmatprep.subr.mxu0 0.0
  %1030 = vmatpush1.msra.mxu0 0.0
  %1031 = vmatprep.subr.mxu0 0.0
  %1032 = vmatpush1.msra.mxu0 0.0
  %1033 = vmatprep.subr.mxu0 0.0
  %1034 = vmatpush1.msra.mxu0 0.0
  %1035 = vmatprep.subr.mxu0 0.0
  %1036 = vmatpush1.msra.mxu0 0.0
  %1037 = vmatprep.subr.mxu0 0.0
  %1038 = vmatpush1.msra.mxu0 0.0
  %1039 = vmatprep.subr.mxu0 0.0
  %1040 = vmatpush1.msra.mxu0 0.0
  %1041 = vmatprep.subr.mxu0 0.0
  %1042 = vmatpush1.msra.mxu0 0.0
  %1043 = vmatprep.mubr.f32.mxu0 0.0
  %1044 = vmatmul.mubr.f32.gmra.mrb[0].mxu0 %v884
  %v1045 = vpop.f32.mrb[0].mxu0
  %v1046 = vadd.f32 %v817, %v1045
  %v1047 = vpop.f32.mrb[0].mxu0
  %1048 = vmatprep.mubr.f32.mxu0 0.0
  %1049 = vmatmul.mubr.f32.gmra.mrb[0].mxu0 %v887
  %v1050 = vpop.f32.mrb[0].mxu0
  %v1051 = vadd.f32 %v817, %v1050
  %v1052 = vpop.f32.mrb[0].mxu0
  %1053 = vmatprep.mubr.f32.mxu0 0.0
  %1054 = vmatmul.mubr.f32.gmra.mrb[0].mxu0 %v890
  %v1055 = vpop.f32.mrb[0].mxu0
  %v1056 = vadd.f32 %v817, %v1055
  %v1057 = vpop.f32.mrb[0].mxu0
  %1058 = vmatprep.mubr.f32.mxu0 0.0
  %1059 = vmatmul.mubr.f32.gmra.mrb[0].mxu0 %v893
  %v1060 = vpop.f32.mrb[0].mxu0
  %v1061 = vadd.f32 %v817, %v1060
  %v1062 = vpop.f32.mrb[0].mxu0
  %1063 = vmatprep.mubr.f32.mxu0 0.0
  %1064 = vmatmul.mubr.f32.gmra.mrb[0].mxu0 %v896
  %v1065 = vpop.f32.mrb[0].mxu0
  %v1066 = vadd.f32 %v817, %v1065
  %v1067 = vpop.f32.mrb[0].mxu0
  %1068 = vmatprep.mubr.f32.mxu0 0.0
  %1069 = vmatmul.mubr.f32.gmra.mrb[0].mxu0 %v899
  %v1070 = vpop.f32.mrb[0].mxu0
  %v1071 = vadd.f32 %v817, %v1070
  %v1072 = vpop.f32.mrb[0].mxu0
  %1073 = vmatprep.mubr.f32.mxu0 0.0
  %1074 = vmatmul.mubr.f32.gmra.mrb[0].mxu0 %v902
  %v1075 = vpop.f32.mrb[0].mxu0
  %v1076 = vadd.f32 %v817, %v1075
  %v1077 = vpop.f32.mrb[0].mxu0
  %1078 = vmatprep.mubr.f32.mxu0 0.0
  %1079 = vmatmul.mubr.f32.gmra.mrb[0].mxu0 %v905
  %v1080 = vpop.f32.mrb[0].mxu0
  %v1081 = vadd.f32 %v817, %v1080
  %v1082 = vpop.f32.mrb[0].mxu0
  %1083 = vmatprep.mubr.f32.mxu0 0.0
  %1084 = vmatmul.mubr.f32.gmra.mrb[0].mxu0 %v908
  %v1085 = vpop.f32.mrb[0].mxu0
  %v1086 = vadd.f32 %v817, %v1085
  %v1087 = vpop.f32.mrb[0].mxu0
  %1088 = vmatprep.mubr.f32.mxu0 0.0
  %1089 = vmatmul.mubr.f32.gmra.mrb[0].mxu0 %v911
  %v1090 = vpop.f32.mrb[0].mxu0
  %v1091 = vadd.f32 %v817, %v1090
  %v1092 = vpop.f32.mrb[0].mxu0
  %1093 = vmatprep.mubr.f32.mxu0 0.0
  %1094 = vmatmul.mubr.f32.gmra.mrb[0].mxu0 %v914
  %v1095 = vpop.f32.mrb[0].mxu0
  %v1096 = vadd.f32 %v817, %v1095
  %v1097 = vpop.f32.mrb[0].mxu0
  %1098 = vmatprep.mubr.f32.mxu0 0.0
  %1099 = vmatmul.mubr.f32.gmra.mrb[0].mxu0 %v917
  %v1100 = vpop.f32.mrb[0].mxu0
  %v1101 = vadd.f32 %v817, %v1100
  %v1102 = vpop.f32.mrb[0].mxu0
  %1103 = vmatprep.mubr.f32.mxu0 0.0
  %1104 = vmatmul.mubr.f32.gmra.mrb[0].mxu0 %v920
  %v1105 = vpop.f32.mrb[0].mxu0
  %v1106 = vadd.f32 %v817, %v1105
  %v1107 = vpop.f32.mrb[0].mxu0
  %1108 = vmatprep.mubr.f32.mxu0 0.0
  %1109 = vmatmul.mubr.f32.gmra.mrb[0].mxu0 %v923
  %v1110 = vpop.f32.mrb[0].mxu0
  %v1111 = vadd.f32 %v817, %v1110
  %v1112 = vpop.f32.mrb[0].mxu0
  %1113 = vmatprep.mubr.f32.mxu0 0.0
  %1114 = vmatmul.mubr.f32.gmra.mrb[0].mxu0 %v926
  %v1115 = vpop.f32.mrb[0].mxu0
  %v1116 = vadd.f32 %v817, %v1115
  %v1117 = vpop.f32.mrb[0].mxu0
  %1118 = vmatprep.mubr.f32.mxu0 0.0
  %1119 = vmatmul.mubr.f32.gmra.mrb[0].mxu0 %v929
  %v1120 = vpop.f32.mrb[0].mxu0
  %v1121 = vadd.f32 %v817, %v1120
  %v1122 = vpop.f32.mrb[0].mxu0
  %1123 = vmatprep.mubr.f32.mxu0 0.0
  %1124 = vmatmul.mubr.f32.gmra.mrb[0].mxu0 %v932
  %v1125 = vpop.f32.mrb[0].mxu0
  %v1126 = vadd.f32 %v817, %v1125
  %v1127 = vpop.f32.mrb[0].mxu0
  %1128 = vmatprep.mubr.f32.mxu0 0.0
  %1129 = vmatmul.mubr.f32.gmra.mrb[0].mxu0 %v935
  %v1130 = vpop.f32.mrb[0].mxu0
  %v1131 = vadd.f32 %v817, %v1130
  %v1132 = vpop.f32.mrb[0].mxu0
  %1133 = vmatprep.mubr.f32.mxu0 0.0
  %1134 = vmatmul.mubr.f32.gmra.mrb[0].mxu0 %v938
  %v1135 = vpop.f32.mrb[0].mxu0
  %v1136 = vadd.f32 %v817, %v1135
  %v1137 = vpop.f32.mrb[0].mxu0
  %1138 = vmatprep.mubr.f32.mxu0 0.0
  %1139 = vmatmul.mubr.f32.gmra.mrb[0].mxu0 %v941
  %v1140 = vpop.f32.mrb[0].mxu0
  %v1141 = vadd.f32 %v817, %v1140
  %v1142 = vpop.f32.mrb[0].mxu0
  %1143 = vmatprep.mubr.f32.mxu0 0.0
  %1144 = vmatmul.mubr.f32.gmra.mrb[0].mxu0 %v944
  %v1145 = vpop.f32.mrb[0].mxu0
  %v1146 = vadd.f32 %v817, %v1145
  %v1147 = vpop.f32.mrb[0].mxu0
  %1148 = vmatprep.mubr.f32.mxu0 0.0
  %1149 = vmatmul.mubr.f32.gmra.mrb[0].mxu0 %v947
  %v1150 = vpop.f32.mrb[0].mxu0
  %v1151 = vadd.f32 %v817, %v1150
  %v1152 = vpop.f32.mrb[0].mxu0
  %1153 = vmatprep.mubr.f32.mxu0 0.0
  %1154 = vmatmul.mubr.f32.gmra.mrb[0].mxu0 %v950
  %v1155 = vpop.f32.mrb[0].mxu0
  %v1156 = vadd.f32 %v817, %v1155
  %v1157 = vpop.f32.mrb[0].mxu0
  %1158 = vmatprep.mubr.f32.mxu0 0.0
  %1159 = vmatmul.mubr.f32.gmra.mrb[0].mxu0 %v953
  %v1160 = vpop.f32.mrb[0].mxu0
  %v1161 = vadd.f32 %v817, %v1160
  %v1162 = vpop.f32.mrb[0].mxu0
  %1163 = vmatprep.mubr.f32.mxu0 0.0
  %1164 = vmatmul.mubr.f32.gmra.mrb[0].mxu0 %v956
  %v1165 = vpop.f32.mrb[0].mxu0
  %v1166 = vadd.f32 %v817, %v1165
  %v1167 = vpop.f32.mrb[0].mxu0
  %1168 = vmatprep.mubr.f32.mxu0 0.0
  %1169 = vmatmul.mubr.f32.gmra.mrb[0].mxu0 %v959
  %v1170 = vpop.f32.mrb[0].mxu0
  %v1171 = vadd.f32 %v817, %v1170
  %v1172 = vpop.f32.mrb[0].mxu0
  %1173 = vmatprep.mubr.f32.mxu0 0.0
  %1174 = vmatmul.mubr.f32.gmra.mrb[0].mxu0 %v962
  %v1175 = vpop.f32.mrb[0].mxu0
  %v1176 = vadd.f32 %v817, %v1175
  %v1177 = vpop.f32.mrb[0].mxu0
  %1178 = vmatprep.mubr.f32.mxu0 0.0
  %1179 = vmatmul.mubr.f32.gmra.mrb[0].mxu0 %v965
  %v1180 = vpop.f32.mrb[0].mxu0
  %v1181 = vadd.f32 %v817, %v1180
  %v1182 = vpop.f32.mrb[0].mxu0
  %1183 = vmatprep.mubr.f32.mxu0 0.0
  %1184 = vmatmul.mubr.f32.gmra.mrb[0].mxu0 %v968
  %v1185 = vpop.f32.mrb[0].mxu0
  %v1186 = vadd.f32 %v817, %v1185
  %v1187 = vpop.f32.mrb[0].mxu0
  %1188 = vmatprep.mubr.f32.mxu0 0.0
  %1189 = vmatmul.mubr.f32.gmra.mrb[0].mxu0 %v971
  %v1190 = vpop.f32.mrb[0].mxu0
  %v1191 = vadd.f32 %v817, %v1190
  %v1192 = vpop.f32.mrb[0].mxu0
  %1193 = vmatprep.mubr.f32.mxu0 0.0
  %1194 = vmatmul.mubr.f32.gmra.mrb[0].mxu0 %v974
  %v1195 = vpop.f32.mrb[0].mxu0
  %v1196 = vadd.f32 %v817, %v1195
  %v1197 = vpop.f32.mrb[0].mxu0
  %1198 = vmatprep.mubr.f32.mxu0 0.0
  %1199 = vmatmul.mubr.f32.gmra.mrb[0].mxu0 %v977
  %v1200 = vpop.f32.mrb[0].mxu0
  %v1201 = vadd.f32 %v817, %v1200
  %v1202 = vpop.f32.mrb[0].mxu0
  %1203 = vdwg.mxu0
  %vm1204 = vcmask 80896
  %1205 = vst.msk [vmem:[%s9] sm:$0xff] %vm1204, %v1046
  %1206 = vst.msk [vmem:[%s9 + $0x8] sm:$0xff] %vm1204, %v1051
  %1207 = vst.msk [vmem:[%s9 + $0x10] sm:$0xff] %vm1204, %v1056
  %1208 = vst.msk [vmem:[%s9 + $0x18] sm:$0xff] %vm1204, %v1061
  %1209 = vst.msk [vmem:[%s9 + $0x20] sm:$0xff] %vm1204, %v1066
  %1210 = vst.msk [vmem:[%s9 + $0x28] sm:$0xff] %vm1204, %v1071
  %1211 = vst.msk [vmem:[%s9 + $0x30] sm:$0xff] %vm1204, %v1076
  %1212 = vst.msk [vmem:[%s9 + $0x38] sm:$0xff] %vm1204, %v1081
  %1213 = vst.msk [vmem:[%s9 + $0x40] sm:$0xff] %vm1204, %v1086
  %1214 = vst.msk [vmem:[%s9 + $0x48] sm:$0xff] %vm1204, %v1091
  %1215 = vst.msk [vmem:[%s9 + $0x50] sm:$0xff] %vm1204, %v1096
  %1216 = vst.msk [vmem:[%s9 + $0x58] sm:$0xff] %vm1204, %v1101
  %1217 = vst.msk [vmem:[%s9 + $0x60] sm:$0xff] %vm1204, %v1106
  %1218 = vst.msk [vmem:[%s9 + $0x68] sm:$0xff] %vm1204, %v1111
  %1219 = vst.msk [vmem:[%s9 + $0x70] sm:$0xff] %vm1204, %v1116
  %1220 = vst.msk [vmem:[%s9 + $0x78] sm:$0xff] %vm1204, %v1121
  %1221 = vst.msk [vmem:[%s9 + $0x80] sm:$0xff] %vm1204, %v1126
  %1222 = vst.msk [vmem:[%s9 + $0x88] sm:$0xff] %vm1204, %v1131
  %1223 = vst.msk [vmem:[%s9 + $0x90] sm:$0xff] %vm1204, %v1136
  %1224 = vst.msk [vmem:[%s9 + $0x98] sm:$0xff] %vm1204, %v1141
  %1225 = vst.msk [vmem:[%s9 + $0xa0] sm:$0xff] %vm1204, %v1146
  %1226 = vst.msk [vmem:[%s9 + $0xa8] sm:$0xff] %vm1204, %v1151
  %1227 = vst.msk [vmem:[%s9 + $0xb0] sm:$0xff] %vm1204, %v1156
  %1228 = vst.msk [vmem:[%s9 + $0xb8] sm:$0xff] %vm1204, %v1161
  %1229 = vst.msk [vmem:[%s9 + $0xc0] sm:$0xff] %vm1204, %v1166
  %1230 = vst.msk [vmem:[%s9 + $0xc8] sm:$0xff] %vm1204, %v1171
  %1231 = vst.msk [vmem:[%s9 + $0xd0] sm:$0xff] %vm1204, %v1176
  %1232 = vst.msk [vmem:[%s9 + $0xd8] sm:$0xff] %vm1204, %v1181
  %1233 = vst.msk [vmem:[%s9 + $0xe0] sm:$0xff] %vm1204, %v1186
  %1234 = vst.msk [vmem:[%s9 + $0xe8] sm:$0xff] %vm1204, %v1191
  %1235 = vst.msk [vmem:[%s9 + $0xf0] sm:$0xff] %vm1204, %v1196
  %1236 = vst.msk [vmem:[%s9 + $0xf8] sm:$0xff] %vm1204, %v1201
  // Predicated region
  $region38: #{tpu_custom_call.1} parent=0 // pred_check
    _
  $region39: #{tpu_custom_call.1} parent=0 // pred_check_branch
    %1238 = sbr.rel (0) target = $region41
  $region40: #{tpu_custom_call.1} parent=0 // pred_region
    _
  $region41: #{tpu_custom_call.1} parent=0 // pred_fallthru
    _
  // Predicated region
  $region42: #{tpu_custom_call.1} parent=0 // pred_check
    _
  $region43: #{tpu_custom_call.1} parent=0 // pred_check_branch
    %1240 = sbr.rel (0) target = $region45
  $region44: #{tpu_custom_call.1} parent=0 // pred_region
    _
  $region45: #{tpu_custom_call.1} parent=0 // pred_fallthru
    _

</llo_original>
